<compile_context>
chip_gen: v5e
topology: v5e:2x2
jax: 0.10.0
libtpu: 0.0.40
codegen_flags: <defaults>
</compile_context>

<pallas_src>
import jax
import jax.numpy as jnp
from jax.experimental import pallas as pl
from jax.experimental.pallas import tpu as pltpu


def _make_discriminator_kernel(n_blocks, eps=1e-5, neg_slope=0.2):
    """Kernel for `n_blocks` (= n_layers - 1) body blocks + bias-free tail.

    Ref order (n_blocks >= 1):
        x, w1, gamma1, beta1, [w_i, gamma_i, beta_i] * (n_blocks-1), w_tail_pad,
        out, acc_scratch
    Ref order (n_blocks == 0):
        x, w_tail_pad, out, acc_scratch
    Grid: 1-D over K tiles of the first (streamed) matmul; acc is the f32 accumulator.
    """

    def bn_lrelu(h, g, be):
        # training-mode BN (batch stats, biased var) fused into one scale/shift
        mean = jnp.mean(h, axis=0, keepdims=True)
        var = jnp.mean((h - mean) ** 2, axis=0, keepdims=True)
        scale = g * jax.lax.rsqrt(var + eps)
        shift = be - mean * scale
        h = h * scale + shift
        return jnp.maximum(h, neg_slope * h)          # LeakyReLU(0.2)

    def kernel(*refs):
        x_ref = refs[0]
        out_ref = refs[-2]
        acc_ref = refs[-1]
        k = pl.program_id(0)
        nk = pl.num_programs(0)

        @pl.when(k == 0)
        def _():
            acc_ref[...] = jnp.zeros_like(acc_ref)

        if n_blocks == 0:
            # tail only: x @ w_tail (K-tiled, accumulated in f32)
            acc_ref[...] += jnp.dot(x_ref[...], refs[1][...],
                                    preferred_element_type=jnp.float32)

            @pl.when(k == nk - 1)
            def _():
                out_ref[...] = acc_ref[...]
        else:
            # first linear, K-tiled (bias dropped: it cancels inside training-mode BN)
            acc_ref[...] += jnp.dot(x_ref[...], refs[1][...],
                                    preferred_element_type=jnp.float32)

            @pl.when(k == nk - 1)
            def _():
                h = bn_lrelu(acc_ref[...], refs[2][...], refs[3][...])
                idx = 4
                for _ in range(n_blocks - 1):
                    w = refs[idx][...]            # bf16 (F_in, H)
                    g = refs[idx + 1][...]        # f32 (1, H)
                    be = refs[idx + 2][...]       # f32 (1, H)
                    idx += 3
                    h = jnp.dot(h.astype(jnp.bfloat16), w,
                                preferred_element_type=jnp.float32)
                    h = bn_lrelu(h, g, be)
                # tail: Linear(hidden, 1, bias=False), lane-padded to 128 columns
                out_ref[...] = jnp.dot(h.astype(jnp.bfloat16), refs[idx][...],
                                       preferred_element_type=jnp.float32)

    return kernel


def discriminator_forward(x, block_params, w_tail, *, eps=1e-5, neg_slope=0.2):
    """x: (N, in_planes) f32.
    block_params: list of (w, b, gamma, beta); w:(F_in,H), b/gamma/beta:(1,H).
      (b is accepted for API parity with the PyTorch module but is not sent to the
       kernel: under training-mode BatchNorm the per-feature bias cancels exactly.)
    w_tail: (H_last, 1).  Returns (N, 1) f32.
    """
    N, K = x.shape
    n_blocks = len(block_params)

    # bf16 MXU inputs (f32 accumulation inside the kernel)
    x_bf = x.astype(jnp.bfloat16)
    w_tail_pad = jnp.pad(w_tail.astype(jnp.bfloat16),
                         ((0, 0), (0, 128 - w_tail.shape[1])))  # lane-dense tail

    # K tile for the streamed first matmul (grid axis); must divide K and be 128-aligned
    tk = K
    for cand in (512, 256, 128):
        if K % cand == 0:
            tk = cand
            break
    nk = K // tk

    flat = []
    in_specs = [pl.BlockSpec((N, tk), lambda k: (0, k))]          # x tiles

    if n_blocks == 0:
        flat.append(w_tail_pad)
        in_specs.append(pl.BlockSpec((tk, 128), lambda k: (k, 0)))
        acc_shape = (N, 128)
    else:
        w1, _b1, g1, be1 = block_params[0]
        h1 = w1.shape[1]
        flat += [w1.astype(jnp.bfloat16), g1, be1]
        in_specs += [pl.BlockSpec((tk, h1), lambda k: (k, 0)),     # W1 tiles
                     pl.BlockSpec((1, h1), lambda k: (0, 0)),
                     pl.BlockSpec((1, h1), lambda k: (0, 0))]
        for (w, _b, g, be) in block_params[1:]:
            flat += [w.astype(jnp.bfloat16), g, be]
            in_specs += [pl.BlockSpec(w.shape, lambda k: (0, 0)),  # resident (not re-DMA'd)
                         pl.BlockSpec(g.shape, lambda k: (0, 0)),
                         pl.BlockSpec(be.shape, lambda k: (0, 0))]
        flat.append(w_tail_pad)
        in_specs.append(pl.BlockSpec(w_tail_pad.shape, lambda k: (0, 0)))
        acc_shape = (N, h1)

    # VMEM budget: resident params + double-buffered tiles + acc + lane-dense output.
    total_bytes = sum(int(a.size) * a.dtype.itemsize for a in [x_bf, *flat])
    total_bytes += N * 128 * 4 + acc_shape[0] * acc_shape[1] * 4
    vmem_limit = int(min(64 << 20, max(16 << 20, 3 * total_bytes)))   # v7x-safe cap

    kernel = _make_discriminator_kernel(n_blocks, eps=eps, neg_slope=neg_slope)
    out_padded = pl.pallas_call(
        kernel,
        out_shape=jax.ShapeDtypeStruct((N, 128), jnp.float32),
        grid=(nk,),
        in_specs=in_specs,
        out_specs=pl.BlockSpec((N, 128), lambda k: (0, 0)),
        scratch_shapes=[pltpu.VMEM(acc_shape, jnp.float32)],
        compiler_params=pltpu.CompilerParams(
            dimension_semantics=("arbitrary",),     # K axis is a reduction
            vmem_limit_bytes=vmem_limit),
    )(x_bf, *flat)

    return out_padded[:, :1]


def init_params(key, in_planes, n_layers=1, hidden=None):
    """Deterministic parameter init mirroring the PyTorch __init__ shape logic."""
    _hidden = in_planes if hidden is None else hidden
    block_params = []
    for i in range(n_layers - 1):
        _in = in_planes if i == 0 else _hidden
        _hidden = int(_hidden // 1.5) if hidden is None else hidden
        key, k_w, k_b, k_g, k_be = jax.random.split(key, 5)
        w = jax.random.normal(k_w, (_in, _hidden), jnp.float32) * 0.05
        b = jax.random.normal(k_b, (1, _hidden), jnp.float32) * 0.01
        # randomize BN affine slightly so the affine path is actually exercised
        gamma = 1.0 + 0.1 * jax.random.normal(k_g, (1, _hidden), jnp.float32)
        beta = 0.1 * jax.random.normal(k_be, (1, _hidden), jnp.float32)
        block_params.append((w, b, gamma, beta))
    key, k_t = jax.random.split(key)
    w_tail = jax.random.normal(k_t, (_hidden, 1), jnp.float32) * 0.05
    return block_params, w_tail


def reference_forward(x, block_params, w_tail, eps=1e-5, neg_slope=0.2):
    """Pure-JAX f32 reference matching the PyTorch forward (bias kept explicitly)."""
    h = x
    for (w, b, g, be) in block_params:
        h = h @ w + b
        mean = jnp.mean(h, axis=0, keepdims=True)
        var = jnp.mean((h - mean) ** 2, axis=0, keepdims=True)
        h = (h - mean) / jnp.sqrt(var + eps) * g + be
        h = jnp.where(h >= 0, h, neg_slope * h)
    return h @ w_tail


if __name__ == "__main__":
    key = jax.random.PRNGKey(0)
    N, in_planes = 16, 32

    key, k_x = jax.random.split(key)
    x = jax.random.normal(k_x, (N, in_planes), jnp.float32)

    # Case 1: n_layers=3, hidden=32  -> two (Linear+BN+LeakyReLU) blocks + bias-free tail
    bp, wt = init_params(key, in_planes, n_layers=3, hidden=32)
    out = jax.block_until_ready(discriminator_forward(x, bp, wt))
    ref = reference_forward(x, bp, wt)
    assert out.shape == (N, 1)
    # tolerance accounts for bf16 MXU inputs vs the f32 reference
    assert jnp.allclose(out, ref, atol=3e-2, rtol=3e-2), "mismatch vs reference (blocks)"

    # Case 2: default n_layers=1 -> tail-only (bias-free Linear in_planes -> 1)
    bp0, wt0 = init_params(key, in_planes, n_layers=1)
    out0 = jax.block_until_ready(discriminator_forward(x, bp0, wt0))
    ref0 = reference_forward(x, bp0, wt0)
    assert out0.shape == (N, 1)
    assert jnp.allclose(out0, ref0, atol=3e-2, rtol=3e-2), "mismatch vs reference (tail-only)"

    print("KERNEL_OK")
</pallas_src>

<mosaic_0001>
module attributes {stable_mosaic.version = 11 : i64} {
  func.func @kernel(%arg0: i32, %arg1: memref<16x32xbf16, #tpu.memory_space<vmem>>, %arg2: memref<32x32xbf16, #tpu.memory_space<vmem>>, %arg3: memref<1x32xf32, #tpu.memory_space<vmem>>, %arg4: memref<1x32xf32, #tpu.memory_space<vmem>>, %arg5: memref<32x32xbf16, #tpu.memory_space<vmem>>, %arg6: memref<1x32xf32, #tpu.memory_space<vmem>>, %arg7: memref<1x32xf32, #tpu.memory_space<vmem>>, %arg8: memref<32x128xbf16, #tpu.memory_space<vmem>>, %arg9: memref<16x128xf32, #tpu.memory_space<vmem>>, %arg10: memref<16x32xf32, #tpu.memory_space<vmem>>) attributes {dimension_semantics = [#tpu.dimension_semantics<arbitrary>], iteration_bounds = array<i64: 1>, scalar_prefetch = 0 : i64, scratch_operands = 1 : i64, tpu.core_type = #tpu.core_type<tc>, window_params = [{transform_indices = @transform_0, window_bounds = array<i64: 16, 32>}, {transform_indices = @transform_1, window_bounds = array<i64: 32, 32>}, {pipeline_mode = #tpu.pipeline_mode<synchronous>, transform_indices = @transform_2, window_bounds = array<i64: 1, 32>}, {pipeline_mode = #tpu.pipeline_mode<synchronous>, transform_indices = @transform_3, window_bounds = array<i64: 1, 32>}, {pipeline_mode = #tpu.pipeline_mode<synchronous>, transform_indices = @transform_4, window_bounds = array<i64: 32, 32>}, {pipeline_mode = #tpu.pipeline_mode<synchronous>, transform_indices = @transform_5, window_bounds = array<i64: 1, 32>}, {pipeline_mode = #tpu.pipeline_mode<synchronous>, transform_indices = @transform_6, window_bounds = array<i64: 1, 32>}, {pipeline_mode = #tpu.pipeline_mode<synchronous>, transform_indices = @transform_7, window_bounds = array<i64: 32, 128>}, {pipeline_mode = #tpu.pipeline_mode<synchronous>, transform_indices = @transform_8, window_bounds = array<i64: 16, 128>}]} {
    %c0_i32 = arith.constant 0 : i32
    %0 = arith.cmpi eq, %arg0, %c0_i32 : i32
    %1 = arith.extui %0 : i1 to i32
    %c0_i32_0 = arith.constant 0 : i32
    %2 = arith.cmpi ne, %1, %c0_i32_0 : i32
    scf.if %2 {
      %cst_10 = arith.constant 0.000000e+00 : f32
      %12 = vector.broadcast %cst_10 : f32 to vector<16x32xf32>
      %c0_11 = arith.constant 0 : index
      %c0_12 = arith.constant 0 : index
      %13 = vector.load %arg10[%c0_11, %c0_12] : memref<16x32xf32, #tpu.memory_space<vmem>>, vector<16x32xf32>
      tpu.vector_store %arg10[%c0_11, %c0_12], %12 {strides = array<i32>} : memref<16x32xf32, #tpu.memory_space<vmem>>, vector<16x32xf32>,
    } else {
    }
    %c0 = arith.constant 0 : index
    %c0_1 = arith.constant 0 : index
    %3 = vector.load %arg10[%c0, %c0_1] : memref<16x32xf32, #tpu.memory_space<vmem>>, vector<16x32xf32>
    %c0_2 = arith.constant 0 : index
    %c0_3 = arith.constant 0 : index
    %4 = vector.load %arg1[%c0_2, %c0_3] : memref<16x32xbf16, #tpu.memory_space<vmem>>, vector<16x32xbf16>
    %c0_4 = arith.constant 0 : index
    %c0_5 = arith.constant 0 : index
    %5 = vector.load %arg2[%c0_4, %c0_5] : memref<32x32xbf16, #tpu.memory_space<vmem>>, vector<32x32xbf16>
    %cst = arith.constant dense<0.000000e+00> : vector<16x32xf32>
    %6 = tpu.matmul %4, %5, %cst {dimension_numbers = #tpu.dot_dimension_numbers<[1], [0], [0], [1], [0, 0, 1, 1], [], []>} : vector<16x32xbf16>, vector<32x32xbf16>, vector<16x32xf32> -> vector<16x32xf32>
    %7 = arith.addf %3, %6 : vector<16x32xf32>
    %c0_6 = arith.constant 0 : index
    %c0_7 = arith.constant 0 : index
    %8 = vector.load %arg10[%c0_6, %c0_7] : memref<16x32xf32, #tpu.memory_space<vmem>>, vector<16x32xf32>
    tpu.vector_store %arg10[%c0_6, %c0_7], %7 {strides = array<i32>} : memref<16x32xf32, #tpu.memory_space<vmem>>, vector<16x32xf32>,
    %c0_i32_8 = arith.constant 0 : i32
    %9 = arith.cmpi eq, %arg0, %c0_i32_8 : i32
    %10 = arith.extui %9 : i1 to i32
    %c0_i32_9 = arith.constant 0 : i32
    %11 = arith.cmpi ne, %10, %c0_i32_9 : i32
    scf.if %11 {
      %c0_10 = arith.constant 0 : index
      %c0_11 = arith.constant 0 : index
      %12 = vector.load %arg10[%c0_10, %c0_11] : memref<16x32xf32, #tpu.memory_space<vmem>>, vector<16x32xf32>
      %c0_12 = arith.constant 0 : index
      %c0_13 = arith.constant 0 : index
      %13 = vector.load %arg3[%c0_12, %c0_13] : memref<1x32xf32, #tpu.memory_space<vmem>>, vector<1x32xf32>
      %c0_14 = arith.constant 0 : index
      %c0_15 = arith.constant 0 : index
      %14 = vector.load %arg4[%c0_14, %c0_15] : memref<1x32xf32, #tpu.memory_space<vmem>>, vector<1x32xf32>
      %cst_16 = arith.constant dense<0.000000e+00> : vector<32xf32>
      %15 = vector.multi_reduction <add>, %12, %cst_16 [0] : vector<16x32xf32> to vector<32xf32>
      %16 = vector.shape_cast %15 : vector<32xf32> to vector<1x32xf32>
      %cst_17 = arith.constant 1.600000e+01 : f32
      %17 = vector.broadcast %cst_17 : f32 to vector<1x32xf32>
      %18 = arith.divf %16, %17 : vector<1x32xf32>
      %19 = vector.broadcast %18 : vector<1x32xf32> to vector<16x32xf32>
      %20 = arith.subf %12, %19 : vector<16x32xf32>
      %21 = arith.mulf %20, %20 : vector<16x32xf32>
      %cst_18 = arith.constant dense<0.000000e+00> : vector<32xf32>
      %22 = vector.multi_reduction <add>, %21, %cst_18 [0] : vector<16x32xf32> to vector<32xf32>
      %23 = vector.shape_cast %22 : vector<32xf32> to vector<1x32xf32>
      %cst_19 = arith.constant 1.600000e+01 : f32
      %24 = vector.broadcast %cst_19 : f32 to vector<1x32xf32>
      %25 = arith.divf %23, %24 : vector<1x32xf32>
      %cst_20 = arith.constant 9.99999974E-6 : f32
      %26 = vector.broadcast %cst_20 : f32 to vector<1x32xf32>
      %27 = arith.addf %25, %26 : vector<1x32xf32>
      %28 = math.rsqrt %27 : vector<1x32xf32>
      %29 = arith.mulf %13, %28 : vector<1x32xf32>
      %30 = arith.mulf %18, %29 : vector<1x32xf32>
      %31 = arith.subf %14, %30 : vector<1x32xf32>
      %32 = vector.broadcast %29 : vector<1x32xf32> to vector<16x32xf32>
      %33 = arith.mulf %12, %32 : vector<16x32xf32>
      %34 = vector.broadcast %31 : vector<1x32xf32> to vector<16x32xf32>
      %35 = arith.addf %33, %34 : vector<16x32xf32>
      %cst_21 = arith.constant 2.000000e-01 : f32
      %36 = vector.broadcast %cst_21 : f32 to vector<16x32xf32>
      %37 = arith.mulf %36, %35 : vector<16x32xf32>
      %38 = arith.maximumf %35, %37 : vector<16x32xf32>
      %c0_22 = arith.constant 0 : index
      %c0_23 = arith.constant 0 : index
      %39 = vector.load %arg5[%c0_22, %c0_23] : memref<32x32xbf16, #tpu.memory_space<vmem>>, vector<32x32xbf16>
      %c0_24 = arith.constant 0 : index
      %c0_25 = arith.constant 0 : index
      %40 = vector.load %arg6[%c0_24, %c0_25] : memref<1x32xf32, #tpu.memory_space<vmem>>, vector<1x32xf32>
      %c0_26 = arith.constant 0 : index
      %c0_27 = arith.constant 0 : index
      %41 = vector.load %arg7[%c0_26, %c0_27] : memref<1x32xf32, #tpu.memory_space<vmem>>, vector<1x32xf32>
      %42 = arith.truncf %38 : vector<16x32xf32> to vector<16x32xbf16>
      %cst_28 = arith.constant dense<0.000000e+00> : vector<16x32xf32>
      %43 = tpu.matmul %42, %39, %cst_28 {dimension_numbers = #tpu.dot_dimension_numbers<[1], [0], [0], [1], [0, 0, 1, 1], [], []>} : vector<16x32xbf16>, vector<32x32xbf16>, vector<16x32xf32> -> vector<16x32xf32>
      %cst_29 = arith.constant dense<0.000000e+00> : vector<32xf32>
      %44 = vector.multi_reduction <add>, %43, %cst_29 [0] : vector<16x32xf32> to vector<32xf32>
      %45 = vector.shape_cast %44 : vector<32xf32> to vector<1x32xf32>
      %cst_30 = arith.constant 1.600000e+01 : f32
      %46 = vector.broadcast %cst_30 : f32 to vector<1x32xf32>
      %47 = arith.divf %45, %46 : vector<1x32xf32>
      %48 = vector.broadcast %47 : vector<1x32xf32> to vector<16x32xf32>
      %49 = arith.subf %43, %48 : vector<16x32xf32>
      %50 = arith.mulf %49, %49 : vector<16x32xf32>
      %cst_31 = arith.constant dense<0.000000e+00> : vector<32xf32>
      %51 = vector.multi_reduction <add>, %50, %cst_31 [0] : vector<16x32xf32> to vector<32xf32>
      %52 = vector.shape_cast %51 : vector<32xf32> to vector<1x32xf32>
      %cst_32 = arith.constant 1.600000e+01 : f32
      %53 = vector.broadcast %cst_32 : f32 to vector<1x32xf32>
      %54 = arith.divf %52, %53 : vector<1x32xf32>
      %cst_33 = arith.constant 9.99999974E-6 : f32
      %55 = vector.broadcast %cst_33 : f32 to vector<1x32xf32>
      %56 = arith.addf %54, %55 : vector<1x32xf32>
      %57 = math.rsqrt %56 : vector<1x32xf32>
      %58 = arith.mulf %40, %57 : vector<1x32xf32>
      %59 = arith.mulf %47, %58 : vector<1x32xf32>
      %60 = arith.subf %41, %59 : vector<1x32xf32>
      %61 = vector.broadcast %58 : vector<1x32xf32> to vector<16x32xf32>
      %62 = arith.mulf %43, %61 : vector<16x32xf32>
      %63 = vector.broadcast %60 : vector<1x32xf32> to vector<16x32xf32>
      %64 = arith.addf %62, %63 : vector<16x32xf32>
      %cst_34 = arith.constant 2.000000e-01 : f32
      %65 = vector.broadcast %cst_34 : f32 to vector<16x32xf32>
      %66 = arith.mulf %65, %64 : vector<16x32xf32>
      %67 = arith.maximumf %64, %66 : vector<16x32xf32>
      %68 = arith.truncf %67 : vector<16x32xf32> to vector<16x32xbf16>
      %c0_35 = arith.constant 0 : index
      %c0_36 = arith.constant 0 : index
      %69 = vector.load %arg8[%c0_35, %c0_36] : memref<32x128xbf16, #tpu.memory_space<vmem>>, vector<32x128xbf16>
      %cst_37 = arith.constant dense<0.000000e+00> : vector<16x128xf32>
      %70 = tpu.matmul %68, %69, %cst_37 {dimension_numbers = #tpu.dot_dimension_numbers<[1], [0], [0], [1], [0, 0, 1, 1], [], []>} : vector<16x32xbf16>, vector<32x128xbf16>, vector<16x128xf32> -> vector<16x128xf32>
      %c0_38 = arith.constant 0 : index
      %c0_39 = arith.constant 0 : index
      %71 = vector.load %arg9[%c0_38, %c0_39] : memref<16x128xf32, #tpu.memory_space<vmem>>, vector<16x128xf32>
      tpu.vector_store %arg9[%c0_38, %c0_39], %70 {strides = array<i32>} : memref<16x128xf32, #tpu.memory_space<vmem>>, vector<16x128xf32>,
    } else {
    }
    return
  }
  func.func @transform_0(%arg0: i32) -> (i32, i32) {
    %c0_i32 = arith.constant 0 : i32
    %c0_i32_0 = arith.constant 0 : i32
    return %c0_i32, %arg0 : i32, i32
  }
  func.func @transform_1(%arg0: i32) -> (i32, i32) {
    %c0_i32 = arith.constant 0 : i32
    %c0_i32_0 = arith.constant 0 : i32
    return %arg0, %c0_i32 : i32, i32
  }
  func.func @transform_2(%arg0: i32) -> (i32, i32) {
    %c0_i32 = arith.constant 0 : i32
    %c0_i32_0 = arith.constant 0 : i32
    %c0_i32_1 = arith.constant 0 : i32
    return %c0_i32, %c0_i32_0 : i32, i32
  }
  func.func @transform_3(%arg0: i32) -> (i32, i32) {
    %c0_i32 = arith.constant 0 : i32
    %c0_i32_0 = arith.constant 0 : i32
    %c0_i32_1 = arith.constant 0 : i32
    return %c0_i32, %c0_i32_0 : i32, i32
  }
  func.func @transform_4(%arg0: i32) -> (i32, i32) {
    %c0_i32 = arith.constant 0 : i32
    %c0_i32_0 = arith.constant 0 : i32
    %c0_i32_1 = arith.constant 0 : i32
    return %c0_i32, %c0_i32_0 : i32, i32
  }
  func.func @transform_5(%arg0: i32) -> (i32, i32) {
    %c0_i32 = arith.constant 0 : i32
    %c0_i32_0 = arith.constant 0 : i32
    %c0_i32_1 = arith.constant 0 : i32
    return %c0_i32, %c0_i32_0 : i32, i32
  }
  func.func @transform_6(%arg0: i32) -> (i32, i32) {
    %c0_i32 = arith.constant 0 : i32
    %c0_i32_0 = arith.constant 0 : i32
    %c0_i32_1 = arith.constant 0 : i32
    return %c0_i32, %c0_i32_0 : i32, i32
  }
  func.func @transform_7(%arg0: i32) -> (i32, i32) {
    %c0_i32 = arith.constant 0 : i32
    %c0_i32_0 = arith.constant 0 : i32
    %c0_i32_1 = arith.constant 0 : i32
    return %c0_i32, %c0_i32_0 : i32, i32
  }
  func.func @transform_8(%arg0: i32) -> (i32, i32) {
    %c0_i32 = arith.constant 0 : i32
    %c0_i32_0 = arith.constant 0 : i32
    %c0_i32_1 = arith.constant 0 : i32
    return %c0_i32, %c0_i32_0 : i32, i32
  }
}

</mosaic_0001>

<llo_original>
// kernel: tpu_custom_call.1
$region0: #{tpu_custom_call.1}
  #allocation0 [shape = 'u32[]', space=smem, size = 0x4, offset = 0x4, fixed_abs, tag = 'smem constant byte address 0x4 - core index']
  #allocation1 [shape = 'u32[72,128]{1,0:T(1,128)}', space=vmem, size = 0x9000, scoped, tag = 'internal scratch']
  #allocation2 [shape = 'f32[16,32]{1,0:T(8,128)}', space=vmem, size = 0x2000, scoped, tag = 'scratch operand']
  %s0 = inlined_call_operand.hbm [shape: bf16[16,32], index: 0, kind: input, shape index: {}]
  %s1 = inlined_call_operand.hbm [shape: bf16[32,32], index: 1, kind: input, shape index: {}]
  %s2 = inlined_call_operand.vmem [shape: f32[1,32], index: 2, kind: input, shape index: {}]
  %s3 = inlined_call_operand.vmem [shape: f32[1,32], index: 3, kind: input, shape index: {}]
  %s4 = inlined_call_operand.hbm [shape: bf16[32,32], index: 4, kind: input, shape index: {}]
  %s5 = inlined_call_operand.vmem [shape: f32[1,32], index: 5, kind: input, shape index: {}]
  %s6 = inlined_call_operand.vmem [shape: f32[1,32], index: 6, kind: input, shape index: {}]
  %s7 = inlined_call_operand.hbm [shape: bf16[32,128], index: 7, kind: input, shape index: {}]
  %s8 = inlined_call_operand.hbm [shape: f32[16,128], index: 8, kind: output, shape index: {}]
  %s9 = sld [smem:[#allocation0]]
  $region66: #{tpu_custom_call.1} parent=0
    _
  %s11 = ssub.s32 1, %s9
  %s12 = scalar_select 0, %s11, %s9
  $region1: #{tpu_custom_call.1} parent=0
    #allocation3 [shape = 'u8[4096]{0}', space=vmem, size = 0x1000, scoped, tag = 'input window, operand 0, single buffered']
    #allocation4 [shape = 's32[1]{0}', space=sflag, size = 0x4, scoped, tag = 'scoped memory for tpu_custom_call.1']
    #allocation5 [shape = 's32[1]{0}', space=sflag, size = 0x4, scoped, tag = 'scoped memory for tpu_custom_call.1']
    #allocation6 [shape = 'u8[8192]{0}', space=vmem, size = 0x2000, scoped, tag = 'input window, operand 1, single buffered']
    #allocation7 [shape = 's32[1]{0}', space=sflag, size = 0x4, scoped, tag = 'scoped memory for tpu_custom_call.1']
    #allocation8 [shape = 'u8[8192]{0}', space=vmem, size = 0x2000, scoped, tag = 'input window, operand 4, single buffered']
    #allocation9 [shape = 'u8[8192]{0}', space=vmem, size = 0x2000, scoped, tag = 'input window, operand 7, single buffered']
    #allocation10 [shape = 's32[1]{0}', space=sflag, size = 0x4, scoped, tag = 'scoped memory for tpu_custom_call.1']
    #allocation11 [shape = 'u8[8192]{0}', space=vmem, size = 0x2000, scoped, tag = 'output window, operand 0, single buffered']
    %13 = vsyncpa [#allocation4], 0
    %14 = vsyncpa [#allocation7], 0
    %15 = vsyncpa [#allocation10], 0
    %16 = vsyncpa [#allocation5], 0
    // Predicated region
    $region2: #{tpu_custom_call.1} parent=1 // pred_check
      _
    $region3: #{tpu_custom_call.1} parent=1 // pred_check_branch
      %18 = sbr.rel (0) target = $region5
    $region4: #{tpu_custom_call.1} parent=1 // pred_region
      %20 = vsyncadd [#allocation4], 0
      %s21 = sshll.u32 %s0, 4
      %s22 = int_to_ptr.hbm [resolvable:$true] %s21
      %s23 = sshll.u32 [#allocation3], 4
      %s24 = int_to_ptr.vmem [resolvable:$true] %s23
      %29 = dma.hbm_to_vmem [thread:$0]  %s22, 128, %s24, [#allocation4], 64, 64, 4
    $region5: #{tpu_custom_call.1} parent=1 // pred_fallthru
      _
    // Predicated region
    $region6: #{tpu_custom_call.1} parent=1 // pred_check
      _
    $region7: #{tpu_custom_call.1} parent=1 // pred_check_branch
      %31 = sbr.rel (0) target = $region9
    $region8: #{tpu_custom_call.1} parent=1 // pred_region
      %33 = vsyncadd [#allocation7], 0
      %s34 = sshll.u32 %s1, 4
      %s35 = int_to_ptr.hbm [resolvable:$true] %s34
      %s36 = sshll.u32 [#allocation6], 4
      %s37 = int_to_ptr.vmem [resolvable:$true] %s36
      %42 = dma.hbm_to_vmem [thread:$0]  %s35, 256, %s37, [#allocation7], 64, 64, 4
    $region9: #{tpu_custom_call.1} parent=1 // pred_fallthru
      _
    // Predicated region
    $region10: #{tpu_custom_call.1} parent=1 // pred_check
      _
    $region11: #{tpu_custom_call.1} parent=1 // pred_check_branch
      %44 = sbr.rel (0) target = $region13
    $region12: #{tpu_custom_call.1} parent=1 // pred_region
      _
    $region13: #{tpu_custom_call.1} parent=1 // pred_fallthru
      _
    // Predicated region
    $region14: #{tpu_custom_call.1} parent=1 // pred_check
      _
    $region15: #{tpu_custom_call.1} parent=1 // pred_check_branch
      %46 = sbr.rel (0) target = $region17
    $region16: #{tpu_custom_call.1} parent=1 // pred_region
      _
    $region17: #{tpu_custom_call.1} parent=1 // pred_fallthru
      _
    // Predicated region
    $region18: #{tpu_custom_call.1} parent=1 // pred_check
      _
    $region19: #{tpu_custom_call.1} parent=1 // pred_check_branch
      %48 = sbr.rel (0) target = $region21
    $region20: #{tpu_custom_call.1} parent=1 // pred_region
      %50 = vsyncadd [#allocation7], 0
      %s51 = sshll.u32 %s4, 4
      %s52 = int_to_ptr.hbm [resolvable:$true] %s51
      %s53 = sshll.u32 [#allocation8], 4
      %s54 = int_to_ptr.vmem [resolvable:$true] %s53
      %59 = dma.hbm_to_vmem [thread:$0]  %s52, 256, %s54, [#allocation7], 64, 64, 4
    $region21: #{tpu_custom_call.1} parent=1 // pred_fallthru
      _
    // Predicated region
    $region22: #{tpu_custom_call.1} parent=1 // pred_check
      _
    $region23: #{tpu_custom_call.1} parent=1 // pred_check_branch
      %61 = sbr.rel (0) target = $region25
    $region24: #{tpu_custom_call.1} parent=1 // pred_region
      _
    $region25: #{tpu_custom_call.1} parent=1 // pred_fallthru
      _
    // Predicated region
    $region26: #{tpu_custom_call.1} parent=1 // pred_check
      _
    $region27: #{tpu_custom_call.1} parent=1 // pred_check_branch
      %63 = sbr.rel (0) target = $region29
    $region28: #{tpu_custom_call.1} parent=1 // pred_region
      _
    $region29: #{tpu_custom_call.1} parent=1 // pred_fallthru
      _
    // Predicated region
    $region30: #{tpu_custom_call.1} parent=1 // pred_check
      _
    $region31: #{tpu_custom_call.1} parent=1 // pred_check_branch
      %65 = sbr.rel (0) target = $region33
    $region32: #{tpu_custom_call.1} parent=1 // pred_region
      %67 = vsyncadd [#allocation10], 0
      %s68 = sshll.u32 %s7, 4
      %s69 = int_to_ptr.hbm [resolvable:$true] %s68
      %s70 = sshll.u32 [#allocation9], 4
      %s71 = int_to_ptr.vmem [resolvable:$true] %s70
      %76 = dma.hbm_to_vmem [thread:$0]  %s69, 256, %s71, [#allocation10], 64, 64, 4
    $region33: #{tpu_custom_call.1} parent=1 // pred_fallthru
      _
    // Predicated region
    $region34: #{tpu_custom_call.1} parent=1 // pred_check
      _
    $region35: #{tpu_custom_call.1} parent=1 // pred_check_branch
      %78 = sbr.rel (0) target = $region37
    $region36: #{tpu_custom_call.1} parent=1 // pred_region
      %80 = dma.done [#allocation4], 128
    $region37: #{tpu_custom_call.1} parent=1 // pred_fallthru
      _
    // Predicated region
    $region38: #{tpu_custom_call.1} parent=1 // pred_check
      _
    $region39: #{tpu_custom_call.1} parent=1 // pred_check_branch
      %82 = sbr.rel (0) target = $region41
    $region40: #{tpu_custom_call.1} parent=1 // pred_region
      %84 = dma.done [#allocation7], 256
    $region41: #{tpu_custom_call.1} parent=1 // pred_fallthru
      _
    // Predicated region
    $region42: #{tpu_custom_call.1} parent=1 // pred_check
      _
    $region43: #{tpu_custom_call.1} parent=1 // pred_check_branch
      %86 = sbr.rel (0) target = $region45
    $region44: #{tpu_custom_call.1} parent=1 // pred_region
      %88 = dma.done [#allocation7], 256
    $region45: #{tpu_custom_call.1} parent=1 // pred_fallthru
      _
    // Predicated region
    $region46: #{tpu_custom_call.1} parent=1 // pred_check
      _
    $region47: #{tpu_custom_call.1} parent=1 // pred_check_branch
      %90 = sbr.rel (0) target = $region49
    $region48: #{tpu_custom_call.1} parent=1 // pred_region
      %92 = dma.done [#allocation10], 256
    $region49: #{tpu_custom_call.1} parent=1 // pred_fallthru
      _
    %p94 = scmp.eq.s32.totalorder 0, 0
    // Predicated region
    $region50: #{tpu_custom_call.1} parent=1 // pred_check
      %p95 = pneg %p94
    $region51: #{tpu_custom_call.1} parent=1 // pred_check_branch
      %97 = sbr.rel (%p95) target = $region53
    $region52: #{tpu_custom_call.1} parent=1 // pred_region
      %vm98 = vcmask 261120
      %99 = vst.msk [vmem:[#allocation2] sm:$0xff] %vm98, 0.0
      %100 = vst.msk [vmem:[#allocation2 + $0x8] sm:$0xff] %vm98, 0.0
    $region53: #{tpu_custom_call.1} parent=1 // pred_fallthru
      _
    %v101 = vld [vmem:[#allocation2] sm:$0xff]
    %v102 = vld [vmem:[#allocation2 + $0x8] sm:$0xff]
    %v103 = vld [vmem:[#allocation3] sm:$0xf]
    %v104 = vld [vmem:[#allocation3 + $0x4] sm:$0xf]
    %v105 = vld [vmem:[#allocation6] sm:$0xf]
    %v106 = vld [vmem:[#allocation6 + $0x4] sm:$0xf]
    %v107 = vld [vmem:[#allocation6 + $0x8] sm:$0xf]
    %v108 = vld [vmem:[#allocation6 + $0xc] sm:$0xf]
    %v111 = vunpack.c.l.b16 %v103
    %v112 = vunpack.c.l.b16 %v104
    %v113 = vpack.c.b16 %v112, %v111
    %v118 = vunpack.c.l.b16 %v105
    %v119 = vunpack.c.l.b16 %v106
    %v120 = vunpack.c.l.b16 %v107
    %v121 = vunpack.c.l.b16 %v108
    %v122 = vpack.c.b16 %v119, %v118
    %v123 = vpack.c.b16 %v121, %v120
    %vm126 = vcmask 261120
    %v128 = vsel %vm126, %v113, 0
    %130 = vmatpush.bf16.msra.mxu0 0
    %131 = vmatpush.bf16.msra.mxu0 0
    %132 = vmatpush.bf16.msra.mxu0 0
    %133 = vmatpush.bf16.msra.mxu0 0
    %134 = vmatpush.bf16.msra.mxu0 0
    %135 = vmatpush.bf16.msra.mxu0 0
    %136 = vmatpush.bf16.msra.mxu0 %v123
    %137 = vmatpush.bf16.msra.mxu0 %v122
    %138 = vmatmul.bf16.gmra.mxu0 %v128
    %v139 = vpop.f32.mrf.mxu0
    %v140 = vadd.f32 0.0, %v139
    %v141 = vpop.f32.mrf.mxu0
    %v142 = vadd.f32 0.0, %v141
    %143 = vdwg.mxu0
    %v144 = vadd.f32 %v101, %v140
    %v145 = vadd.f32 %v102, %v142
    %146 = vst.msk [vmem:[#allocation2] sm:$0xff] %vm126, %v144
    %147 = vst.msk [vmem:[#allocation2 + $0x8] sm:$0xff] %vm126, %v145
    // Predicated region
    $region54: #{tpu_custom_call.1} parent=1 // pred_check
      %p148 = pneg %p94
    $region55: #{tpu_custom_call.1} parent=1 // pred_check_branch
      %150 = sbr.rel (%p148) target = $region57
    $region56: #{tpu_custom_call.1} parent=1 // pred_region
      %v151 = vld [vmem:[#allocation2] sm:$0xff]
      %v152 = vld [vmem:[#allocation2 + $0x8] sm:$0xff]
      %v153 = vld [vmem:[%s2] sm:$0x1]
      %v154 = vld [vmem:[%s3] sm:$0x1]
      %v155 = vsel %vm126, %v151, 0.0
      %v156 = vsel %vm126, %v152, 0.0
      %v157 = vadd.f32 %v155, %v156
      %v158 = vrot.slane %v157, 4
      %v159 = vadd.f32 %v157, %v158
      %v160 = vrot.slane %v159, 2
      %v161 = vadd.f32 %v159, %v160
      %v162 = vrot.slane %v161, 1
      %v163 = vadd.f32 %v161, %v162
      %v164 = vrcp.pop 16.0
      %v165 = vmul.f32 16.0, %v164
      %v166 = vsub.f32 1.0, %v165
      %v167 = vmul.f32 %v164, %v166
      %v168 = vadd.f32 %v164, %v167
      %vm169 = vweird.f32 %v164
      %v170 = vsel %vm169, %v164, %v168
      %v171 = vmul.f32 %v163, %v170
      %v172 = vsub.f32 %v151, %v171
      %v173 = vsub.f32 %v152, %v171
      %v174 = vmul.f32 %v172, %v172
      %v175 = vmul.f32 %v173, %v173
      %v176 = vsel %vm126, %v174, 0.0
      %v177 = vsel %vm126, %v175, 0.0
      %v178 = vadd.f32 %v176, %v177
      %v179 = vrot.slane %v178, 4
      %v180 = vadd.f32 %v178, %v179
      %v181 = vrot.slane %v180, 2
      %v182 = vadd.f32 %v180, %v181
      %v183 = vrot.slane %v182, 1
      %v184 = vadd.f32 %v182, %v183
      %v185 = vmul.f32 %v184, %v170
      %v186 = vadd.f32 %v185, 1e-05
      %v187 = vrsqrt.pop %v186
      %v188 = vmul.f32 %v187, %v186
      %v189 = vmul.f32 %v188, %v187
      %v190 = vmul.f32 0.5, %v189
      %v191 = vsub.f32 1.5, %v190
      %v192 = vmul.f32 %v187, %v191
      %vm193 = vweird.f32 %v186
      %vm194 = vweird.f32 %v187
      %vm195 = vmor %vm193, %vm194
      %v196 = vsel %vm195, %v187, %v192
      %v197 = vmul.f32 %v153, %v196
      %v198 = vmul.f32 %v171, %v197
      %v199 = vsub.f32 %v154, %v198
      %v201 = vperm.slane %v197, 0
      %v203 = vmul.f32 %v151, %v201
      %v204 = vmul.f32 %v152, %v201
      %v206 = vperm.slane %v199, 0
      %v208 = vadd.f32 %v203, %v206
      %v209 = vadd.f32 %v204, %v206
      %v210 = vmul.f32 %v208, 0.2
      %v211 = vmul.f32 %v209, 0.2
      %v212 = vmax.f32 %v208, %v210
      %v213 = vmax.f32 %v209, %v211
      %v214 = vld [vmem:[#allocation8] sm:$0xf]
      %v215 = vld [vmem:[#allocation8 + $0x4] sm:$0xf]
      %v216 = vld [vmem:[#allocation8 + $0x8] sm:$0xf]
      %v217 = vld [vmem:[#allocation8 + $0xc] sm:$0xf]
      %v218 = vld [vmem:[%s5] sm:$0x1]
      %v219 = vld [vmem:[%s6] sm:$0x1]
      %v220 = vpack.c.bf16 %v213, %v212
      %v225 = vunpack.c.l.b16 %v214
      %v226 = vunpack.c.l.b16 %v215
      %v227 = vunpack.c.l.b16 %v216
      %v228 = vunpack.c.l.b16 %v217
      %v229 = vpack.c.b16 %v226, %v225
      %v230 = vpack.c.b16 %v228, %v227
      %v234 = vsel %vm126, %v220, 0
      %236 = vmatpush.bf16.msra.mxu0 0
      %237 = vmatpush.bf16.msra.mxu0 0
      %238 = vmatpush.bf16.msra.mxu0 0
      %239 = vmatpush.bf16.msra.mxu0 0
      %240 = vmatpush.bf16.msra.mxu0 0
      %241 = vmatpush.bf16.msra.mxu0 0
      %242 = vmatpush.bf16.msra.mxu0 %v230
      %243 = vmatpush.bf16.msra.mxu0 %v229
      %244 = vmatmul.bf16.gmra.mxu0 %v234
      %v245 = vpop.f32.mrf.mxu0
      %v246 = vadd.f32 0.0, %v245
      %v247 = vpop.f32.mrf.mxu0
      %v248 = vadd.f32 0.0, %v247
      %249 = vdwg.mxu0
      %v250 = vsel %vm126, %v246, 0.0
      %v251 = vsel %vm126, %v248, 0.0
      %v252 = vadd.f32 %v250, %v251
      %v253 = vrot.slane %v252, 4
      %v254 = vadd.f32 %v252, %v253
      %v255 = vrot.slane %v254, 2
      %v256 = vadd.f32 %v254, %v255
      %v257 = vrot.slane %v256, 1
      %v258 = vadd.f32 %v256, %v257
      %v259 = vmul.f32 %v258, %v170
      %v260 = vsub.f32 %v246, %v259
      %v261 = vsub.f32 %v248, %v259
      %v262 = vmul.f32 %v260, %v260
      %v263 = vmul.f32 %v261, %v261
      %v264 = vsel %vm126, %v262, 0.0
      %v265 = vsel %vm126, %v263, 0.0
      %v266 = vadd.f32 %v264, %v265
      %v267 = vrot.slane %v266, 4
      %v268 = vadd.f32 %v266, %v267
      %v269 = vrot.slane %v268, 2
      %v270 = vadd.f32 %v268, %v269
      %v271 = vrot.slane %v270, 1
      %v272 = vadd.f32 %v270, %v271
      %v273 = vmul.f32 %v272, %v170
      %v274 = vadd.f32 %v273, 1e-05
      %v275 = vrsqrt.pop %v274
      %v276 = vmul.f32 %v275, %v274
      %v277 = vmul.f32 %v276, %v275
      %v278 = vmul.f32 0.5, %v277
      %v279 = vsub.f32 1.5, %v278
      %v280 = vmul.f32 %v275, %v279
      %vm281 = vweird.f32 %v274
      %vm282 = vweird.f32 %v275
      %vm283 = vmor %vm281, %vm282
      %v284 = vsel %vm283, %v275, %v280
      %v285 = vmul.f32 %v218, %v284
      %v286 = vmul.f32 %v259, %v285
      %v287 = vsub.f32 %v219, %v286
      %v289 = vperm.slane %v285, 0
      %v291 = vmul.f32 %v246, %v289
      %v292 = vmul.f32 %v248, %v289
      %v294 = vperm.slane %v287, 0
      %v296 = vadd.f32 %v291, %v294
      %v297 = vadd.f32 %v292, %v294
      %v298 = vmul.f32 %v296, 0.2
      %v299 = vmul.f32 %v297, 0.2
      %v300 = vmax.f32 %v296, %v298
      %v301 = vmax.f32 %v297, %v299
      %v302 = vpack.c.bf16 %v301, %v300
      %v303 = vld [vmem:[#allocation9] sm:$0xf]
      %v304 = vld [vmem:[#allocation9 + $0x4] sm:$0xf]
      %v305 = vld [vmem:[#allocation9 + $0x8] sm:$0xf]
      %v306 = vld [vmem:[#allocation9 + $0xc] sm:$0xf]
      %v311 = vunpack.c.l.b16 %v303
      %v312 = vunpack.c.l.b16 %v304
      %v313 = vunpack.c.l.b16 %v305
      %v314 = vunpack.c.l.b16 %v306
      %v315 = vpack.c.b16 %v312, %v311
      %v316 = vpack.c.b16 %v314, %v313
      %v320 = vsel %vm126, %v302, 0
      %322 = vmatpush.bf16.msra.mxu0 0
      %323 = vmatpush.bf16.msra.mxu0 0
      %324 = vmatpush.bf16.msra.mxu0 0
      %325 = vmatpush.bf16.msra.mxu0 0
      %326 = vmatpush.bf16.msra.mxu0 0
      %327 = vmatpush.bf16.msra.mxu0 0
      %328 = vmatpush.bf16.msra.mxu0 %v316
      %329 = vmatpush.bf16.msra.mxu0 %v315
      %330 = vmatmul.bf16.gmra.mxu0 %v320
      %v331 = vpop.f32.mrf.mxu0
      %v332 = vadd.f32 0.0, %v331
      %v333 = vpop.f32.mrf.mxu0
      %v334 = vadd.f32 0.0, %v333
      %335 = vdwg.mxu0
      %336 = vst [vmem:[#allocation11] sm:$0xff] %v332
      %337 = vst [vmem:[#allocation11 + $0x8] sm:$0xff] %v334
    $region57: #{tpu_custom_call.1} parent=1 // pred_fallthru
      _
    // Predicated region
    $region58: #{tpu_custom_call.1} parent=1 // pred_check
      _
    $region59: #{tpu_custom_call.1} parent=1 // pred_check_branch
      %339 = sbr.rel (0) target = $region61
    $region60: #{tpu_custom_call.1} parent=1 // pred_region
      %341 = vsyncadd [#allocation5], 0
      %s342 = sshll.u32 [#allocation11], 4
      %s343 = int_to_ptr.vmem [resolvable:$true] %s342
      %s344 = sshll.u32 %s8, 4
      %s345 = int_to_ptr.hbm [resolvable:$true] %s344
      %350 = dma.vmem_to_hbm [thread:$0]  %s343, 256, %s345, [#allocation5], 128, 128, 8
    $region61: #{tpu_custom_call.1} parent=1 // pred_fallthru
      _
    // Predicated region
    $region62: #{tpu_custom_call.1} parent=1 // pred_check
      _
    $region63: #{tpu_custom_call.1} parent=1 // pred_check_branch
      %352 = sbr.rel (0) target = $region65
    $region64: #{tpu_custom_call.1} parent=1 // pred_region
      %354 = dma.done [#allocation5], 256
    $region65: #{tpu_custom_call.1} parent=1 // pred_fallthru
      _
    %355 = vsyncpa [#allocation4], 1
    %356 = vsyncpa [#allocation7], 1
    %357 = vsyncpa [#allocation10], 1
    %358 = vsyncpa [#allocation5], 1

</llo_original>
